<compile_context>
chip_gen: v7x
topology: tpu7x:2x2x1
jax: 0.10.0
libtpu: 0.0.40
codegen_flags: <defaults>
</compile_context>

<pallas_src>
from functools import partial

import jax
import jax.numpy as jnp
import numpy as np
from jax import lax
from jax.experimental import pallas as pl
from jax.experimental.pallas import tpu as pltpu

N_CLASSES = 10              # "n" of the module
H = W = 28                  # MNIST spatial size (needed so 4*12*12 == 576)
PAD = 2
KH = KW = 9
C_OUT = 4
CONV_HW = H + 2 * PAD - KH + 1          # 24
POOL_HW = CONV_HW // 2                  # 12
Q = POOL_HW * POOL_HW                   # 144 pooled positions per channel
TAPS = KH * KW                          # 81 conv taps
FLAT = C_OUT * Q                        # 576 = Linear in_features
N_CAND = 4                              # 2x2 max-pool candidates
POOL_BLK = 256                          # lane-aligned block per candidate (>= Q)


@partial(jax.jit, static_argnames=("matmul_dtype",))
def mnist_encoder_conv_forward(x, conv_w, conv_b, fc_w, fc_b,
                               matmul_dtype=jnp.bfloat16):
    """x: (1,1,28,28) f32 NCHW; conv_w: (4,1,9,9); conv_b: (4,);
       fc_w: (n,576); fc_b: (n,).  Returns (n,) softmax probabilities."""
    n = fc_b.shape[0]
    n_pad = ((n + 127) // 128) * 128            # lane-dense class dim

    # ---- host-side im2col: 81 static slices, pure reshape/transpose/pad ----
    x_pad = jnp.pad(x[0, 0].astype(jnp.float32), ((PAD, PAD), (PAD, PAD)))   # (32,32)
    taps = [x_pad[di:di + CONV_HW, dj:dj + CONV_HW]
            for di in range(KH) for dj in range(KW)]
    ph = jnp.stack(taps, axis=0)                                  # (81,24,24) [t,i,j]
    ph = ph.reshape(TAPS, POOL_HW, 2, POOL_HW, 2)                 # [t,pi,a,pj,b]
    ph = ph.transpose(2, 4, 0, 1, 3)                              # [a,b,t,pi,pj]
    ph = ph.reshape(N_CAND, TAPS, Q)                              # p = a*2+b
    ph = jnp.pad(ph, ((0, 0), (0, 0), (0, POOL_BLK - Q)))         # (4,81,256)
    patches = ph.transpose(1, 0, 2).reshape(TAPS, N_CAND * POOL_BLK)  # (81,1024)
    patches = patches.astype(matmul_dtype)                        # col = p*256+q

    # ---- parameters, padded to lane-dense layouts ----
    wc = conv_w.reshape(C_OUT, TAPS).astype(matmul_dtype)         # (4,81)
    bc = conv_b.reshape(C_OUT, 1).astype(jnp.float32)             # (4,1)

    # FC weight expanded so channel c's logits occupy lane block c:
    #   G[q, c*n_pad + j] = fc_w[j, c*144 + q]   (zero for pad rows/cols)
    w3 = fc_w.reshape(n, C_OUT, Q).transpose(2, 1, 0)             # (144,4,n)
    w3 = jnp.pad(w3, ((0, POOL_BLK - Q), (0, 0), (0, n_pad - n))) # (256,4,128)
    fcw_big = w3.reshape(POOL_BLK, C_OUT * n_pad).astype(matmul_dtype)  # (256,512)

    # Padded classes get a -1e30 bias -> exp underflows to exactly 0.
    fcb = jnp.pad(fc_b.astype(jnp.float32), (0, n_pad - n),
                  constant_values=-1e30).reshape(1, n_pad)        # (1,128)

    # ---- the Pallas kernel: 2 MXU matmuls + VPU/EUP epilogue ----
    def kernel(p_ref, wc_ref, bc_ref, g_ref, fcb_ref, out_ref):
        # conv1 over all 4 pool candidates in ONE matmul: (4,81)@(81,1024).
        conv = jnp.dot(wc_ref[...], p_ref[...],
                       preferred_element_type=jnp.float32)        # (4,1024) f32
        conv = jnp.maximum(conv + bc_ref[...], 0.0)               # bias + ReLU (f32)

        # MaxPool2d(2): elementwise max over the 4 lane-aligned blocks.
        pooled = conv[:, 0:POOL_BLK]
        for p in range(1, N_CAND):
            pooled = jnp.maximum(pooled, conv[:, p * POOL_BLK:(p + 1) * POOL_BLK])
        # pooled: (4,256) f32; lanes >= 144 are never read out (zero weights).

        # Linear(576, n) as ONE matmul: (4,256)@(256, 4*n_pad).
        tmp = jnp.dot(pooled.astype(g_ref.dtype), g_ref[...],
                      preferred_element_type=jnp.float32)         # (4, 4*n_pad)
        # Block-diagonal read-out: channel c contributes lane block c.
        logits = fcb_ref[...]                                     # (1, n_pad)
        for c in range(C_OUT):
            logits = logits + tmp[c:c + 1, c * n_pad:(c + 1) * n_pad]

        # Softmax(-1) in f32; divide on the EUP via approx reciprocal.
        m = jnp.max(logits, axis=-1, keepdims=True)
        e = jnp.exp(logits - m)
        s = jnp.sum(e, axis=-1, keepdims=True)
        out_ref[...] = e * pl.reciprocal(s, approx=True)

    vmem = pl.BlockSpec(memory_space=pltpu.MemorySpace.VMEM)      # whole array in VMEM
    out = pl.pallas_call(
        kernel,
        out_shape=jax.ShapeDtypeStruct((1, n_pad), jnp.float32),
        in_specs=[vmem, vmem, vmem, vmem, vmem],
        out_specs=vmem,
    )(patches, wc, bc, fcw_big, fcb)
    return out[0, :n]                       # x.view(-1) drops the batch dim


def reference_forward(x, conv_w, conv_b, fc_w, fc_b):
    """Pure-JAX f32 reference mirroring the PyTorch forward."""
    conv = lax.conv_general_dilated(
        x, conv_w, window_strides=(1, 1), padding=((PAD, PAD), (PAD, PAD)),
        dimension_numbers=("NCHW", "OIHW", "NCHW"),
        precision=lax.Precision.HIGHEST)
    conv = jax.nn.relu(conv + conv_b.reshape(1, C_OUT, 1, 1))
    pooled = lax.reduce_window(conv, -jnp.inf, lax.max,
                               (1, 1, 2, 2), (1, 1, 2, 2), "VALID")
    flat = pooled.reshape(-1)                                   # (576,)
    logits = jnp.dot(fc_w, flat, precision=lax.Precision.HIGHEST) + fc_b
    return jax.nn.softmax(logits, axis=-1)


if __name__ == "__main__":
    key = jax.random.PRNGKey(0)
    k1, k2, k3, k4, k5 = jax.random.split(key, 5)
    # Deterministic synthetic parameters (shapes from the module's __init__).
    x = jax.random.normal(k1, (1, 1, H, W), jnp.float32)
    conv_w = jax.random.normal(k2, (C_OUT, 1, KH, KW), jnp.float32) * 0.1
    conv_b = jax.random.normal(k3, (C_OUT,), jnp.float32) * 0.1
    fc_w = jax.random.normal(k4, (N_CLASSES, FLAT), jnp.float32) * 0.05
    fc_b = jax.random.normal(k5, (N_CLASSES,), jnp.float32) * 0.05

    ref = jax.block_until_ready(
        reference_forward(x, conv_w, conv_b, fc_w, fc_b))

    # f32 MXU operands: matches the PyTorch/f32 reference tightly.
    out_f32 = jax.block_until_ready(
        mnist_encoder_conv_forward(x, conv_w, conv_b, fc_w, fc_b,
                                   matmul_dtype=jnp.float32))
    assert out_f32.shape == (N_CLASSES,)
    np.testing.assert_allclose(np.asarray(out_f32), np.asarray(ref),
                               atol=1e-3, rtol=1e-3)

    # bf16 MXU operands (f32 accumulation): default fast path for v6e/v7x;
    # looser tolerance reflects bf16 operand rounding only.
    out_bf16 = jax.block_until_ready(
        mnist_encoder_conv_forward(x, conv_w, conv_b, fc_w, fc_b,
                                   matmul_dtype=jnp.bfloat16))
    assert out_bf16.shape == (N_CLASSES,)
    np.testing.assert_allclose(np.asarray(out_bf16), np.asarray(ref),
                               atol=1e-2, rtol=1e-2)

    print("KERNEL_OK")
</pallas_src>

<mosaic_0001>
module attributes {stable_mosaic.version = 11 : i64} {
  func.func @kernel(%arg0: memref<81x1024xf32, #tpu.memory_space<vmem>>, %arg1: memref<4x81xf32, #tpu.memory_space<vmem>>, %arg2: memref<4x1xf32, #tpu.memory_space<vmem>>, %arg3: memref<256x512xf32, #tpu.memory_space<vmem>>, %arg4: memref<1x128xf32, #tpu.memory_space<vmem>>, %arg5: memref<1x128xf32, #tpu.memory_space<vmem>>) attributes {dimension_semantics = [], scalar_prefetch = 0 : i64, scratch_operands = 0 : i64, tpu.core_type = #tpu.core_type<tc>} {
    %c0 = arith.constant 0 : index
    %c0_0 = arith.constant 0 : index
    %0 = vector.load %arg1[%c0, %c0_0] : memref<4x81xf32, #tpu.memory_space<vmem>>, vector<4x81xf32>
    %c0_1 = arith.constant 0 : index
    %c0_2 = arith.constant 0 : index
    %1 = vector.load %arg0[%c0_1, %c0_2] : memref<81x1024xf32, #tpu.memory_space<vmem>>, vector<81x1024xf32>
    %cst = arith.constant dense<0.000000e+00> : vector<4x1024xf32>
    %2 = tpu.matmul %0, %1, %cst {dimension_numbers = #tpu.dot_dimension_numbers<[1], [0], [0], [1], [0, 0, 1, 1], [], []>} : vector<4x81xf32>, vector<81x1024xf32>, vector<4x1024xf32> -> vector<4x1024xf32>
    %c0_3 = arith.constant 0 : index
    %c0_4 = arith.constant 0 : index
    %3 = vector.load %arg2[%c0_3, %c0_4] : memref<4x1xf32, #tpu.memory_space<vmem>>, vector<4x1xf32>
    %4 = vector.broadcast %3 : vector<4x1xf32> to vector<4x1024xf32>
    %5 = arith.addf %2, %4 : vector<4x1024xf32>
    %cst_5 = arith.constant 0.000000e+00 : f32
    %6 = vector.broadcast %cst_5 : f32 to vector<4x1024xf32>
    %7 = arith.maximumf %5, %6 : vector<4x1024xf32>
    %8 = vector.extract_strided_slice %7 {offsets = [0, 0], sizes = [4, 256], strides = [1, 1]} : vector<4x1024xf32> to vector<4x256xf32>
    %9 = vector.extract_strided_slice %7 {offsets = [0, 256], sizes = [4, 256], strides = [1, 1]} : vector<4x1024xf32> to vector<4x256xf32>
    %10 = arith.maximumf %8, %9 : vector<4x256xf32>
    %11 = vector.extract_strided_slice %7 {offsets = [0, 512], sizes = [4, 256], strides = [1, 1]} : vector<4x1024xf32> to vector<4x256xf32>
    %12 = arith.maximumf %10, %11 : vector<4x256xf32>
    %13 = vector.extract_strided_slice %7 {offsets = [0, 768], sizes = [4, 256], strides = [1, 1]} : vector<4x1024xf32> to vector<4x256xf32>
    %14 = arith.maximumf %12, %13 : vector<4x256xf32>
    %c0_6 = arith.constant 0 : index
    %c0_7 = arith.constant 0 : index
    %15 = vector.load %arg3[%c0_6, %c0_7] : memref<256x512xf32, #tpu.memory_space<vmem>>, vector<256x512xf32>
    %cst_8 = arith.constant dense<0.000000e+00> : vector<4x512xf32>
    %16 = tpu.matmul %14, %15, %cst_8 {dimension_numbers = #tpu.dot_dimension_numbers<[1], [0], [0], [1], [0, 0, 1, 1], [], []>} : vector<4x256xf32>, vector<256x512xf32>, vector<4x512xf32> -> vector<4x512xf32>
    %c0_9 = arith.constant 0 : index
    %c0_10 = arith.constant 0 : index
    %17 = vector.load %arg4[%c0_9, %c0_10] : memref<1x128xf32, #tpu.memory_space<vmem>>, vector<1x128xf32>
    %18 = vector.extract_strided_slice %16 {offsets = [0, 0], sizes = [1, 128], strides = [1, 1]} : vector<4x512xf32> to vector<1x128xf32>
    %19 = arith.addf %17, %18 : vector<1x128xf32>
    %20 = vector.extract_strided_slice %16 {offsets = [1, 128], sizes = [1, 128], strides = [1, 1]} : vector<4x512xf32> to vector<1x128xf32>
    %21 = arith.addf %19, %20 : vector<1x128xf32>
    %22 = vector.extract_strided_slice %16 {offsets = [2, 256], sizes = [1, 128], strides = [1, 1]} : vector<4x512xf32> to vector<1x128xf32>
    %23 = arith.addf %21, %22 : vector<1x128xf32>
    %24 = vector.extract_strided_slice %16 {offsets = [3, 384], sizes = [1, 128], strides = [1, 1]} : vector<4x512xf32> to vector<1x128xf32>
    %25 = arith.addf %23, %24 : vector<1x128xf32>
    %cst_11 = arith.constant dense<0xFF800000> : vector<1xf32>
    %26 = vector.multi_reduction <maximumf>, %25, %cst_11 [1] : vector<1x128xf32> to vector<1xf32>
    %27 = vector.shape_cast %26 : vector<1xf32> to vector<1x1xf32>
    %28 = vector.broadcast %27 : vector<1x1xf32> to vector<1x128xf32>
    %29 = arith.subf %25, %28 : vector<1x128xf32>
    %30 = math.exp %29 : vector<1x128xf32>
    %cst_12 = arith.constant dense<0.000000e+00> : vector<1xf32>
    %31 = vector.multi_reduction <add>, %30, %cst_12 [1] : vector<1x128xf32> to vector<1xf32>
    %32 = vector.shape_cast %31 : vector<1xf32> to vector<1x1xf32>
    %33 = tpu.reciprocal %32 {approx = true} : vector<1x1xf32> -> vector<1x1xf32>
    %34 = vector.broadcast %33 : vector<1x1xf32> to vector<1x128xf32>
    %35 = arith.mulf %30, %34 : vector<1x128xf32>
    %c0_13 = arith.constant 0 : index
    %c0_14 = arith.constant 0 : index
    %36 = vector.load %arg5[%c0_13, %c0_14] : memref<1x128xf32, #tpu.memory_space<vmem>>, vector<1x128xf32>
    tpu.vector_store %arg5[%c0_13, %c0_14], %35 {strides = array<i32>} : memref<1x128xf32, #tpu.memory_space<vmem>>, vector<1x128xf32>,
    return
  }
}

</mosaic_0001>

<llo_original>
// kernel: mnist_encoder_conv_forward.1
$region0: #{mnist_encoder_conv_forward.1}
  #allocation0 [shape = 'u32[]', space=smem, size = 0x4, offset = 0x4, fixed_abs, tag = 'smem constant byte address 0x4 - core index']
  #allocation1 [shape = 'u32[144,128]{1,0:T(1,128)}', space=vmem, size = 0x12000, scoped, tag = 'internal scratch']
  %s0 = inlined_call_operand.vmem [shape: f32[81,1024], index: 0, kind: input, shape index: {}]
  %s1 = inlined_call_operand.vmem [shape: f32[4,81], index: 1, kind: input, shape index: {}]
  %s2 = inlined_call_operand.vmem [shape: f32[4,1], index: 2, kind: input, shape index: {}]
  %s3 = inlined_call_operand.vmem [shape: f32[256,512], index: 3, kind: input, shape index: {}]
  %s4 = inlined_call_operand.vmem [shape: f32[1,128], index: 4, kind: input, shape index: {}]
  %s5 = inlined_call_operand.vmem [shape: f32[1,128], index: 5, kind: output, shape index: {}]
  %s6 = sld [smem:[#allocation0]]
  $region30: #{mnist_encoder_conv_forward.1} parent=0
    _
  %s8 = ssub.s32 1, %s6
  %s9 = scalar_select 0, %s8, %s6
  // Predicated region
  $region2: #{mnist_encoder_conv_forward.1} parent=0 // pred_check
    _
  $region3: #{mnist_encoder_conv_forward.1} parent=0 // pred_check_branch
    %11 = sbr.rel (0) target = $region5
  $region4: #{mnist_encoder_conv_forward.1} parent=0 // pred_region
    _
  $region5: #{mnist_encoder_conv_forward.1} parent=0 // pred_fallthru
    _
  // Predicated region
  $region6: #{mnist_encoder_conv_forward.1} parent=0 // pred_check
    _
  $region7: #{mnist_encoder_conv_forward.1} parent=0 // pred_check_branch
    %13 = sbr.rel (0) target = $region9
  $region8: #{mnist_encoder_conv_forward.1} parent=0 // pred_region
    _
  $region9: #{mnist_encoder_conv_forward.1} parent=0 // pred_fallthru
    _
  // Predicated region
  $region10: #{mnist_encoder_conv_forward.1} parent=0 // pred_check
    _
  $region11: #{mnist_encoder_conv_forward.1} parent=0 // pred_check_branch
    %15 = sbr.rel (0) target = $region13
  $region12: #{mnist_encoder_conv_forward.1} parent=0 // pred_region
    _
  $region13: #{mnist_encoder_conv_forward.1} parent=0 // pred_fallthru
    _
  // Predicated region
  $region14: #{mnist_encoder_conv_forward.1} parent=0 // pred_check
    _
  $region15: #{mnist_encoder_conv_forward.1} parent=0 // pred_check_branch
    %17 = sbr.rel (0) target = $region17
  $region16: #{mnist_encoder_conv_forward.1} parent=0 // pred_region
    _
  $region17: #{mnist_encoder_conv_forward.1} parent=0 // pred_fallthru
    _
  // Predicated region
  $region18: #{mnist_encoder_conv_forward.1} parent=0 // pred_check
    _
  $region19: #{mnist_encoder_conv_forward.1} parent=0 // pred_check_branch
    %19 = sbr.rel (0) target = $region21
  $region20: #{mnist_encoder_conv_forward.1} parent=0 // pred_region
    _
  $region21: #{mnist_encoder_conv_forward.1} parent=0 // pred_fallthru
    _
  %v20 = vld [vmem:[%s1] sm:$0xf]
  %v21 = vld [vmem:[%s0] sm:$0xff]
  %v22 = vld [vmem:[%s0 + $0x8] sm:$0xff]
  %v23 = vld [vmem:[%s0 + $0x10] sm:$0xff]
  %v24 = vld [vmem:[%s0 + $0x18] sm:$0xff]
  %v25 = vld [vmem:[%s0 + $0x20] sm:$0xff]
  %v26 = vld [vmem:[%s0 + $0x28] sm:$0xff]
  %v27 = vld [vmem:[%s0 + $0x30] sm:$0xff]
  %v28 = vld [vmem:[%s0 + $0x38] sm:$0xff]
  %v29 = vld [vmem:[%s0 + $0x40] sm:$0xff]
  %v30 = vld [vmem:[%s0 + $0x48] sm:$0xff]
  %v31 = vld [vmem:[%s0 + $0x50] sm:$0xff]
  %v32 = vld [vmem:[%s0 + $0x58] sm:$0xff]
  %v33 = vld [vmem:[%s0 + $0x60] sm:$0xff]
  %v34 = vld [vmem:[%s0 + $0x68] sm:$0xff]
  %v35 = vld [vmem:[%s0 + $0x70] sm:$0xff]
  %v36 = vld [vmem:[%s0 + $0x78] sm:$0xff]
  %v37 = vld [vmem:[%s0 + $0x80] sm:$0xff]
  %v38 = vld [vmem:[%s0 + $0x88] sm:$0xff]
  %v39 = vld [vmem:[%s0 + $0x90] sm:$0xff]
  %v40 = vld [vmem:[%s0 + $0x98] sm:$0xff]
  %v41 = vld [vmem:[%s0 + $0xa0] sm:$0xff]
  %v42 = vld [vmem:[%s0 + $0xa8] sm:$0xff]
  %v43 = vld [vmem:[%s0 + $0xb0] sm:$0xff]
  %v44 = vld [vmem:[%s0 + $0xb8] sm:$0xff]
  %v45 = vld [vmem:[%s0 + $0xc0] sm:$0xff]
  %v46 = vld [vmem:[%s0 + $0xc8] sm:$0xff]
  %v47 = vld [vmem:[%s0 + $0xd0] sm:$0xff]
  %v48 = vld [vmem:[%s0 + $0xd8] sm:$0xff]
  %v49 = vld [vmem:[%s0 + $0xe0] sm:$0xff]
  %v50 = vld [vmem:[%s0 + $0xe8] sm:$0xff]
  %v51 = vld [vmem:[%s0 + $0xf0] sm:$0xff]
  %v52 = vld [vmem:[%s0 + $0xf8] sm:$0xff]
  %v53 = vld [vmem:[%s0 + $0x100] sm:$0xff]
  %v54 = vld [vmem:[%s0 + $0x108] sm:$0xff]
  %v55 = vld [vmem:[%s0 + $0x110] sm:$0xff]
  %v56 = vld [vmem:[%s0 + $0x118] sm:$0xff]
  %v57 = vld [vmem:[%s0 + $0x120] sm:$0xff]
  %v58 = vld [vmem:[%s0 + $0x128] sm:$0xff]
  %v59 = vld [vmem:[%s0 + $0x130] sm:$0xff]
  %v60 = vld [vmem:[%s0 + $0x138] sm:$0xff]
  %v61 = vld [vmem:[%s0 + $0x140] sm:$0xff]
  %v62 = vld [vmem:[%s0 + $0x148] sm:$0xff]
  %v63 = vld [vmem:[%s0 + $0x150] sm:$0xff]
  %v64 = vld [vmem:[%s0 + $0x158] sm:$0xff]
  %v65 = vld [vmem:[%s0 + $0x160] sm:$0xff]
  %v66 = vld [vmem:[%s0 + $0x168] sm:$0xff]
  %v67 = vld [vmem:[%s0 + $0x170] sm:$0xff]
  %v68 = vld [vmem:[%s0 + $0x178] sm:$0xff]
  %v69 = vld [vmem:[%s0 + $0x180] sm:$0xff]
  %v70 = vld [vmem:[%s0 + $0x188] sm:$0xff]
  %v71 = vld [vmem:[%s0 + $0x190] sm:$0xff]
  %v72 = vld [vmem:[%s0 + $0x198] sm:$0xff]
  %v73 = vld [vmem:[%s0 + $0x1a0] sm:$0xff]
  %v74 = vld [vmem:[%s0 + $0x1a8] sm:$0xff]
  %v75 = vld [vmem:[%s0 + $0x1b0] sm:$0xff]
  %v76 = vld [vmem:[%s0 + $0x1b8] sm:$0xff]
  %v77 = vld [vmem:[%s0 + $0x1c0] sm:$0xff]
  %v78 = vld [vmem:[%s0 + $0x1c8] sm:$0xff]
  %v79 = vld [vmem:[%s0 + $0x1d0] sm:$0xff]
  %v80 = vld [vmem:[%s0 + $0x1d8] sm:$0xff]
  %v81 = vld [vmem:[%s0 + $0x1e0] sm:$0xff]
  %v82 = vld [vmem:[%s0 + $0x1e8] sm:$0xff]
  %v83 = vld [vmem:[%s0 + $0x1f0] sm:$0xff]
  %v84 = vld [vmem:[%s0 + $0x1f8] sm:$0xff]
  %v85 = vld [vmem:[%s0 + $0x200] sm:$0xff]
  %v86 = vld [vmem:[%s0 + $0x208] sm:$0xff]
  %v87 = vld [vmem:[%s0 + $0x210] sm:$0xff]
  %v88 = vld [vmem:[%s0 + $0x218] sm:$0xff]
  %v89 = vld [vmem:[%s0 + $0x220] sm:$0xff]
  %v90 = vld [vmem:[%s0 + $0x228] sm:$0xff]
  %v91 = vld [vmem:[%s0 + $0x230] sm:$0xff]
  %v92 = vld [vmem:[%s0 + $0x238] sm:$0xff]
  %v93 = vld [vmem:[%s0 + $0x240] sm:$0xff]
  %v94 = vld [vmem:[%s0 + $0x248] sm:$0xff]
  %v95 = vld [vmem:[%s0 + $0x250] sm:$0xff]
  %v96 = vld [vmem:[%s0 + $0x258] sm:$0xff]
  %v97 = vld [vmem:[%s0 + $0x260] sm:$0xff]
  %v98 = vld [vmem:[%s0 + $0x268] sm:$0xff]
  %v99 = vld [vmem:[%s0 + $0x270] sm:$0xff]
  %v100 = vld [vmem:[%s0 + $0x278] sm:$0xff]
  %v101 = vld [vmem:[%s0 + $0x280] sm:$0x1]
  %v102 = vld [vmem:[%s0 + $0x288] sm:$0x1]
  %v103 = vld [vmem:[%s0 + $0x290] sm:$0x1]
  %v104 = vld [vmem:[%s0 + $0x298] sm:$0x1]
  %v105 = vld [vmem:[%s0 + $0x2a0] sm:$0x1]
  %v106 = vld [vmem:[%s0 + $0x2a8] sm:$0x1]
  %v107 = vld [vmem:[%s0 + $0x2b0] sm:$0x1]
  %v108 = vld [vmem:[%s0 + $0x2b8] sm:$0x1]
  %v109 = vld [vmem:[%s2] sm:$0xf]
  %111 = vset.pattern.permute.xlu0 0
  %112 = vperm.xlu0 %111, %v109
  %v113 = vpop.permute.xlu0 %112
  %vm115 = vcmask 662528
  %v117 = vsel %vm115, %v20, 0
  %vm119 = vcmask 1040384
  %v121 = vsel %vm119, %v101, 0
  %v124 = vsel %vm119, %v102, 0
  %v127 = vsel %vm119, %v103, 0
  %v130 = vsel %vm119, %v104, 0
  %v133 = vsel %vm119, %v105, 0
  %v136 = vsel %vm119, %v106, 0
  %v139 = vsel %vm119, %v107, 0
  %v142 = vsel %vm119, %v108, 0
  %144 = vmatprep.subr.mxu0 %v22
  %145 = vmatpush1.msra.mxu0 %v21
  %146 = vmatprep.subr.mxu0 %v30
  %147 = vmatpush1.msra.mxu0 %v29
  %148 = vmatprep.subr.mxu0 %v38
  %149 = vmatpush1.msra.mxu0 %v37
  %150 = vmatprep.subr.mxu0 %v46
  %151 = vmatpush1.msra.mxu0 %v45
  %152 = vmatprep.subr.mxu0 %v54
  %153 = vmatpush1.msra.mxu0 %v53
  %154 = vmatprep.subr.mxu0 %v62
  %155 = vmatpush1.msra.mxu0 %v61
  %156 = vmatprep.subr.mxu0 %v70
  %157 = vmatpush1.msra.mxu0 %v69
  %158 = vmatprep.subr.mxu0 %v78
  %159 = vmatpush1.msra.mxu0 %v77
  %160 = vmatprep.subr.mxu0 %v86
  %161 = vmatpush1.msra.mxu0 %v85
  %162 = vmatprep.subr.mxu0 %v94
  %163 = vmatpush1.msra.mxu0 %v93
  %164 = vmatprep.subr.mxu0 %v124
  %165 = vmatpush1.msra.mxu0 %v121
  %166 = vmatprep.subr.mxu0 0.0
  %167 = vmatpush1.msra.mxu0 0.0
  %168 = vmatprep.subr.mxu0 0.0
  %169 = vmatpush1.msra.mxu0 0.0
  %170 = vmatprep.subr.mxu0 0.0
  %171 = vmatpush1.msra.mxu0 0.0
  %172 = vmatprep.subr.mxu0 0.0
  %173 = vmatpush1.msra.mxu0 0.0
  %174 = vmatprep.subr.mxu0 0.0
  %175 = vmatpush1.msra.mxu0 0.0
  %176 = vmatprep.subr.mxu0 0.0
  %177 = vmatpush1.msra.mxu0 0.0
  %178 = vmatprep.subr.mxu0 0.0
  %179 = vmatpush1.msra.mxu0 0.0
  %180 = vmatprep.subr.mxu0 0.0
  %181 = vmatpush1.msra.mxu0 0.0
  %182 = vmatprep.subr.mxu0 0.0
  %183 = vmatpush1.msra.mxu0 0.0
  %184 = vmatprep.subr.mxu0 0.0
  %185 = vmatpush1.msra.mxu0 0.0
  %186 = vmatprep.subr.mxu0 0.0
  %187 = vmatpush1.msra.mxu0 0.0
  %188 = vmatprep.subr.mxu0 0.0
  %189 = vmatpush1.msra.mxu0 0.0
  %190 = vmatprep.subr.mxu0 0.0
  %191 = vmatpush1.msra.mxu0 0.0
  %192 = vmatprep.subr.mxu0 0.0
  %193 = vmatpush1.msra.mxu0 0.0
  %194 = vmatprep.subr.mxu0 0.0
  %195 = vmatpush1.msra.mxu0 0.0
  %196 = vmatprep.subr.mxu0 0.0
  %197 = vmatpush1.msra.mxu0 0.0
  %198 = vmatprep.subr.mxu0 0.0
  %199 = vmatpush1.msra.mxu0 0.0
  %200 = vmatprep.subr.mxu0 0.0
  %201 = vmatpush1.msra.mxu0 0.0
  %202 = vmatprep.subr.mxu0 0.0
  %203 = vmatpush1.msra.mxu0 0.0
  %204 = vmatprep.subr.mxu0 0.0
  %205 = vmatpush1.msra.mxu0 0.0
  %206 = vmatprep.subr.mxu0 0.0
  %207 = vmatpush1.msra.mxu0 0.0
  %208 = vmatprep.mubr.f32.mxu0 0.0
  %209 = vmatmul.mubr.f32.gmra.mrb[0].mxu0 %v117
  %v210 = vpop.f32.mrb[0].mxu0
  %v211 = vadd.f32 %v113, %v210
  %v212 = vpop.f32.mrb[0].mxu0
  %v213 = vadd.f32 %v113, %v212
  %214 = vdwg.mxu0
  %215 = vmatprep.subr.mxu0 %v24
  %216 = vmatpush1.msra.mxu0 %v23
  %217 = vmatprep.subr.mxu0 %v32
  %218 = vmatpush1.msra.mxu0 %v31
  %219 = vmatprep.subr.mxu0 %v40
  %220 = vmatpush1.msra.mxu0 %v39
  %221 = vmatprep.subr.mxu0 %v48
  %222 = vmatpush1.msra.mxu0 %v47
  %223 = vmatprep.subr.mxu0 %v56
  %224 = vmatpush1.msra.mxu0 %v55
  %225 = vmatprep.subr.mxu0 %v64
  %226 = vmatpush1.msra.mxu0 %v63
  %227 = vmatprep.subr.mxu0 %v72
  %228 = vmatpush1.msra.mxu0 %v71
  %229 = vmatprep.subr.mxu0 %v80
  %230 = vmatpush1.msra.mxu0 %v79
  %231 = vmatprep.subr.mxu0 %v88
  %232 = vmatpush1.msra.mxu0 %v87
  %233 = vmatprep.subr.mxu0 %v96
  %234 = vmatpush1.msra.mxu0 %v95
  %235 = vmatprep.subr.mxu0 %v130
  %236 = vmatpush1.msra.mxu0 %v127
  %237 = vmatprep.subr.mxu0 0.0
  %238 = vmatpush1.msra.mxu0 0.0
  %239 = vmatprep.subr.mxu0 0.0
  %240 = vmatpush1.msra.mxu0 0.0
  %241 = vmatprep.subr.mxu0 0.0
  %242 = vmatpush1.msra.mxu0 0.0
  %243 = vmatprep.subr.mxu0 0.0
  %244 = vmatpush1.msra.mxu0 0.0
  %245 = vmatprep.subr.mxu0 0.0
  %246 = vmatpush1.msra.mxu0 0.0
  %247 = vmatprep.subr.mxu0 0.0
  %248 = vmatpush1.msra.mxu0 0.0
  %249 = vmatprep.subr.mxu0 0.0
  %250 = vmatpush1.msra.mxu0 0.0
  %251 = vmatprep.subr.mxu0 0.0
  %252 = vmatpush1.msra.mxu0 0.0
  %253 = vmatprep.subr.mxu0 0.0
  %254 = vmatpush1.msra.mxu0 0.0
  %255 = vmatprep.subr.mxu0 0.0
  %256 = vmatpush1.msra.mxu0 0.0
  %257 = vmatprep.subr.mxu0 0.0
  %258 = vmatpush1.msra.mxu0 0.0
  %259 = vmatprep.subr.mxu0 0.0
  %260 = vmatpush1.msra.mxu0 0.0
  %261 = vmatprep.subr.mxu0 0.0
  %262 = vmatpush1.msra.mxu0 0.0
  %263 = vmatprep.subr.mxu0 0.0
  %264 = vmatpush1.msra.mxu0 0.0
  %265 = vmatprep.subr.mxu0 0.0
  %266 = vmatpush1.msra.mxu0 0.0
  %267 = vmatprep.subr.mxu0 0.0
  %268 = vmatpush1.msra.mxu0 0.0
  %269 = vmatprep.subr.mxu0 0.0
  %270 = vmatpush1.msra.mxu0 0.0
  %271 = vmatprep.subr.mxu0 0.0
  %272 = vmatpush1.msra.mxu0 0.0
  %273 = vmatprep.subr.mxu0 0.0
  %274 = vmatpush1.msra.mxu0 0.0
  %275 = vmatprep.subr.mxu0 0.0
  %276 = vmatpush1.msra.mxu0 0.0
  %277 = vmatprep.subr.mxu0 0.0
  %278 = vmatpush1.msra.mxu0 0.0
  %279 = vmatprep.mubr.f32.mxu0 0.0
  %280 = vmatmul.mubr.f32.gmra.mrb[0].mxu0 %v117
  %v281 = vpop.f32.mrb[0].mxu0
  %v282 = vadd.f32 %v113, %v281
  %v283 = vpop.f32.mrb[0].mxu0
  %v284 = vadd.f32 %v113, %v283
  %285 = vdwg.mxu0
  %286 = vmatprep.subr.mxu0 %v26
  %287 = vmatpush1.msra.mxu0 %v25
  %288 = vmatprep.subr.mxu0 %v34
  %289 = vmatpush1.msra.mxu0 %v33
  %290 = vmatprep.subr.mxu0 %v42
  %291 = vmatpush1.msra.mxu0 %v41
  %292 = vmatprep.subr.mxu0 %v50
  %293 = vmatpush1.msra.mxu0 %v49
  %294 = vmatprep.subr.mxu0 %v58
  %295 = vmatpush1.msra.mxu0 %v57
  %296 = vmatprep.subr.mxu0 %v66
  %297 = vmatpush1.msra.mxu0 %v65
  %298 = vmatprep.subr.mxu0 %v74
  %299 = vmatpush1.msra.mxu0 %v73
  %300 = vmatprep.subr.mxu0 %v82
  %301 = vmatpush1.msra.mxu0 %v81
  %302 = vmatprep.subr.mxu0 %v90
  %303 = vmatpush1.msra.mxu0 %v89
  %304 = vmatprep.subr.mxu0 %v98
  %305 = vmatpush1.msra.mxu0 %v97
  %306 = vmatprep.subr.mxu0 %v136
  %307 = vmatpush1.msra.mxu0 %v133
  %308 = vmatprep.subr.mxu0 0.0
  %309 = vmatpush1.msra.mxu0 0.0
  %310 = vmatprep.subr.mxu0 0.0
  %311 = vmatpush1.msra.mxu0 0.0
  %312 = vmatprep.subr.mxu0 0.0
  %313 = vmatpush1.msra.mxu0 0.0
  %314 = vmatprep.subr.mxu0 0.0
  %315 = vmatpush1.msra.mxu0 0.0
  %316 = vmatprep.subr.mxu0 0.0
  %317 = vmatpush1.msra.mxu0 0.0
  %318 = vmatprep.subr.mxu0 0.0
  %319 = vmatpush1.msra.mxu0 0.0
  %320 = vmatprep.subr.mxu0 0.0
  %321 = vmatpush1.msra.mxu0 0.0
  %322 = vmatprep.subr.mxu0 0.0
  %323 = vmatpush1.msra.mxu0 0.0
  %324 = vmatprep.subr.mxu0 0.0
  %325 = vmatpush1.msra.mxu0 0.0
  %326 = vmatprep.subr.mxu0 0.0
  %327 = vmatpush1.msra.mxu0 0.0
  %328 = vmatprep.subr.mxu0 0.0
  %329 = vmatpush1.msra.mxu0 0.0
  %330 = vmatprep.subr.mxu0 0.0
  %331 = vmatpush1.msra.mxu0 0.0
  %332 = vmatprep.subr.mxu0 0.0
  %333 = vmatpush1.msra.mxu0 0.0
  %334 = vmatprep.subr.mxu0 0.0
  %335 = vmatpush1.msra.mxu0 0.0
  %336 = vmatprep.subr.mxu0 0.0
  %337 = vmatpush1.msra.mxu0 0.0
  %338 = vmatprep.subr.mxu0 0.0
  %339 = vmatpush1.msra.mxu0 0.0
  %340 = vmatprep.subr.mxu0 0.0
  %341 = vmatpush1.msra.mxu0 0.0
  %342 = vmatprep.subr.mxu0 0.0
  %343 = vmatpush1.msra.mxu0 0.0
  %344 = vmatprep.subr.mxu0 0.0
  %345 = vmatpush1.msra.mxu0 0.0
  %346 = vmatprep.subr.mxu0 0.0
  %347 = vmatpush1.msra.mxu0 0.0
  %348 = vmatprep.subr.mxu0 0.0
  %349 = vmatpush1.msra.mxu0 0.0
  %350 = vmatprep.mubr.f32.mxu0 0.0
  %351 = vmatmul.mubr.f32.gmra.mrb[0].mxu0 %v117
  %v352 = vpop.f32.mrb[0].mxu0
  %v353 = vadd.f32 %v113, %v352
  %v354 = vpop.f32.mrb[0].mxu0
  %v355 = vadd.f32 %v113, %v354
  %356 = vdwg.mxu0
  %357 = vmatprep.subr.mxu0 %v28
  %358 = vmatpush1.msra.mxu0 %v27
  %359 = vmatprep.subr.mxu0 %v36
  %360 = vmatpush1.msra.mxu0 %v35
  %361 = vmatprep.subr.mxu0 %v44
  %362 = vmatpush1.msra.mxu0 %v43
  %363 = vmatprep.subr.mxu0 %v52
  %364 = vmatpush1.msra.mxu0 %v51
  %365 = vmatprep.subr.mxu0 %v60
  %366 = vmatpush1.msra.mxu0 %v59
  %367 = vmatprep.subr.mxu0 %v68
  %368 = vmatpush1.msra.mxu0 %v67
  %369 = vmatprep.subr.mxu0 %v76
  %370 = vmatpush1.msra.mxu0 %v75
  %371 = vmatprep.subr.mxu0 %v84
  %372 = vmatpush1.msra.mxu0 %v83
  %373 = vmatprep.subr.mxu0 %v92
  %374 = vmatpush1.msra.mxu0 %v91
  %375 = vmatprep.subr.mxu0 %v100
  %376 = vmatpush1.msra.mxu0 %v99
  %377 = vmatprep.subr.mxu0 %v142
  %378 = vmatpush1.msra.mxu0 %v139
  %379 = vmatprep.subr.mxu0 0.0
  %380 = vmatpush1.msra.mxu0 0.0
  %381 = vmatprep.subr.mxu0 0.0
  %382 = vmatpush1.msra.mxu0 0.0
  %383 = vmatprep.subr.mxu0 0.0
  %384 = vmatpush1.msra.mxu0 0.0
  %385 = vmatprep.subr.mxu0 0.0
  %386 = vmatpush1.msra.mxu0 0.0
  %387 = vmatprep.subr.mxu0 0.0
  %388 = vmatpush1.msra.mxu0 0.0
  %389 = vmatprep.subr.mxu0 0.0
  %390 = vmatpush1.msra.mxu0 0.0
  %391 = vmatprep.subr.mxu0 0.0
  %392 = vmatpush1.msra.mxu0 0.0
  %393 = vmatprep.subr.mxu0 0.0
  %394 = vmatpush1.msra.mxu0 0.0
  %395 = vmatprep.subr.mxu0 0.0
  %396 = vmatpush1.msra.mxu0 0.0
  %397 = vmatprep.subr.mxu0 0.0
  %398 = vmatpush1.msra.mxu0 0.0
  %399 = vmatprep.subr.mxu0 0.0
  %400 = vmatpush1.msra.mxu0 0.0
  %401 = vmatprep.subr.mxu0 0.0
  %402 = vmatpush1.msra.mxu0 0.0
  %403 = vmatprep.subr.mxu0 0.0
  %404 = vmatpush1.msra.mxu0 0.0
  %405 = vmatprep.subr.mxu0 0.0
  %406 = vmatpush1.msra.mxu0 0.0
  %407 = vmatprep.subr.mxu0 0.0
  %408 = vmatpush1.msra.mxu0 0.0
  %409 = vmatprep.subr.mxu0 0.0
  %410 = vmatpush1.msra.mxu0 0.0
  %411 = vmatprep.subr.mxu0 0.0
  %412 = vmatpush1.msra.mxu0 0.0
  %413 = vmatprep.subr.mxu0 0.0
  %414 = vmatpush1.msra.mxu0 0.0
  %415 = vmatprep.subr.mxu0 0.0
  %416 = vmatpush1.msra.mxu0 0.0
  %417 = vmatprep.subr.mxu0 0.0
  %418 = vmatpush1.msra.mxu0 0.0
  %419 = vmatprep.subr.mxu0 0.0
  %420 = vmatpush1.msra.mxu0 0.0
  %421 = vmatprep.mubr.f32.mxu0 0.0
  %422 = vmatmul.mubr.f32.gmra.mrb[0].mxu0 %v117
  %v423 = vpop.f32.mrb[0].mxu0
  %v424 = vadd.f32 %v113, %v423
  %v425 = vpop.f32.mrb[0].mxu0
  %v426 = vadd.f32 %v113, %v425
  %427 = vdwg.mxu0
  %v428 = vmax.f32 %v211, 0.0
  %v429 = vmax.f32 %v213, 0.0
  %v430 = vmax.f32 %v282, 0.0
  %v431 = vmax.f32 %v284, 0.0
  %v432 = vmax.f32 %v353, 0.0
  %v433 = vmax.f32 %v355, 0.0
  %v434 = vmax.f32 %v424, 0.0
  %v435 = vmax.f32 %v426, 0.0
  %v436 = vmax.f32 %v428, %v430
  %v437 = vmax.f32 %v429, %v431
  %v438 = vmax.f32 %v436, %v432
  %v439 = vmax.f32 %v437, %v433
  %v440 = vmax.f32 %v438, %v434
  %v441 = vmax.f32 %v439, %v435
  %v442 = vld [vmem:[%s3] sm:$0xff]
  %v443 = vld [vmem:[%s3 + $0x8] sm:$0xff]
  %v444 = vld [vmem:[%s3 + $0x10] sm:$0xff]
  %v445 = vld [vmem:[%s3 + $0x18] sm:$0xff]
  %v446 = vld [vmem:[%s3 + $0x20] sm:$0xff]
  %v447 = vld [vmem:[%s3 + $0x28] sm:$0xff]
  %v448 = vld [vmem:[%s3 + $0x30] sm:$0xff]
  %v449 = vld [vmem:[%s3 + $0x38] sm:$0xff]
  %v450 = vld [vmem:[%s3 + $0x40] sm:$0xff]
  %v451 = vld [vmem:[%s3 + $0x48] sm:$0xff]
  %v452 = vld [vmem:[%s3 + $0x50] sm:$0xff]
  %v453 = vld [vmem:[%s3 + $0x58] sm:$0xff]
  %v454 = vld [vmem:[%s3 + $0x60] sm:$0xff]
  %v455 = vld [vmem:[%s3 + $0x68] sm:$0xff]
  %v456 = vld [vmem:[%s3 + $0x70] sm:$0xff]
  %v457 = vld [vmem:[%s3 + $0x78] sm:$0xff]
  %v458 = vld [vmem:[%s3 + $0x80] sm:$0xff]
  %v459 = vld [vmem:[%s3 + $0x88] sm:$0xff]
  %v460 = vld [vmem:[%s3 + $0x90] sm:$0xff]
  %v461 = vld [vmem:[%s3 + $0x98] sm:$0xff]
  %v462 = vld [vmem:[%s3 + $0xa0] sm:$0xff]
  %v463 = vld [vmem:[%s3 + $0xa8] sm:$0xff]
  %v464 = vld [vmem:[%s3 + $0xb0] sm:$0xff]
  %v465 = vld [vmem:[%s3 + $0xb8] sm:$0xff]
  %v466 = vld [vmem:[%s3 + $0xc0] sm:$0xff]
  %v467 = vld [vmem:[%s3 + $0xc8] sm:$0xff]
  %v468 = vld [vmem:[%s3 + $0xd0] sm:$0xff]
  %v469 = vld [vmem:[%s3 + $0xd8] sm:$0xff]
  %v470 = vld [vmem:[%s3 + $0xe0] sm:$0xff]
  %v471 = vld [vmem:[%s3 + $0xe8] sm:$0xff]
  %v472 = vld [vmem:[%s3 + $0xf0] sm:$0xff]
  %v473 = vld [vmem:[%s3 + $0xf8] sm:$0xff]
  %v474 = vld [vmem:[%s3 + $0x100] sm:$0xff]
  %v475 = vld [vmem:[%s3 + $0x108] sm:$0xff]
  %v476 = vld [vmem:[%s3 + $0x110] sm:$0xff]
  %v477 = vld [vmem:[%s3 + $0x118] sm:$0xff]
  %v478 = vld [vmem:[%s3 + $0x120] sm:$0xff]
  %v479 = vld [vmem:[%s3 + $0x128] sm:$0xff]
  %v480 = vld [vmem:[%s3 + $0x130] sm:$0xff]
  %v481 = vld [vmem:[%s3 + $0x138] sm:$0xff]
  %v482 = vld [vmem:[%s3 + $0x140] sm:$0xff]
  %v483 = vld [vmem:[%s3 + $0x148] sm:$0xff]
  %v484 = vld [vmem:[%s3 + $0x150] sm:$0xff]
  %v485 = vld [vmem:[%s3 + $0x158] sm:$0xff]
  %v486 = vld [vmem:[%s3 + $0x160] sm:$0xff]
  %v487 = vld [vmem:[%s3 + $0x168] sm:$0xff]
  %v488 = vld [vmem:[%s3 + $0x170] sm:$0xff]
  %v489 = vld [vmem:[%s3 + $0x178] sm:$0xff]
  %v490 = vld [vmem:[%s3 + $0x180] sm:$0xff]
  %v491 = vld [vmem:[%s3 + $0x188] sm:$0xff]
  %v492 = vld [vmem:[%s3 + $0x190] sm:$0xff]
  %v493 = vld [vmem:[%s3 + $0x198] sm:$0xff]
  %v494 = vld [vmem:[%s3 + $0x1a0] sm:$0xff]
  %v495 = vld [vmem:[%s3 + $0x1a8] sm:$0xff]
  %v496 = vld [vmem:[%s3 + $0x1b0] sm:$0xff]
  %v497 = vld [vmem:[%s3 + $0x1b8] sm:$0xff]
  %v498 = vld [vmem:[%s3 + $0x1c0] sm:$0xff]
  %v499 = vld [vmem:[%s3 + $0x1c8] sm:$0xff]
  %v500 = vld [vmem:[%s3 + $0x1d0] sm:$0xff]
  %v501 = vld [vmem:[%s3 + $0x1d8] sm:$0xff]
  %v502 = vld [vmem:[%s3 + $0x1e0] sm:$0xff]
  %v503 = vld [vmem:[%s3 + $0x1e8] sm:$0xff]
  %v504 = vld [vmem:[%s3 + $0x1f0] sm:$0xff]
  %v505 = vld [vmem:[%s3 + $0x1f8] sm:$0xff]
  %v506 = vld [vmem:[%s3 + $0x200] sm:$0xff]
  %v507 = vld [vmem:[%s3 + $0x208] sm:$0xff]
  %v508 = vld [vmem:[%s3 + $0x210] sm:$0xff]
  %v509 = vld [vmem:[%s3 + $0x218] sm:$0xff]
  %v510 = vld [vmem:[%s3 + $0x220] sm:$0xff]
  %v511 = vld [vmem:[%s3 + $0x228] sm:$0xff]
  %v512 = vld [vmem:[%s3 + $0x230] sm:$0xff]
  %v513 = vld [vmem:[%s3 + $0x238] sm:$0xff]
  %v514 = vld [vmem:[%s3 + $0x240] sm:$0xff]
  %v515 = vld [vmem:[%s3 + $0x248] sm:$0xff]
  %v516 = vld [vmem:[%s3 + $0x250] sm:$0xff]
  %v517 = vld [vmem:[%s3 + $0x258] sm:$0xff]
  %v518 = vld [vmem:[%s3 + $0x260] sm:$0xff]
  %v519 = vld [vmem:[%s3 + $0x268] sm:$0xff]
  %v520 = vld [vmem:[%s3 + $0x270] sm:$0xff]
  %v521 = vld [vmem:[%s3 + $0x278] sm:$0xff]
  %v522 = vld [vmem:[%s3 + $0x280] sm:$0xff]
  %v523 = vld [vmem:[%s3 + $0x288] sm:$0xff]
  %v524 = vld [vmem:[%s3 + $0x290] sm:$0xff]
  %v525 = vld [vmem:[%s3 + $0x298] sm:$0xff]
  %v526 = vld [vmem:[%s3 + $0x2a0] sm:$0xff]
  %v527 = vld [vmem:[%s3 + $0x2a8] sm:$0xff]
  %v528 = vld [vmem:[%s3 + $0x2b0] sm:$0xff]
  %v529 = vld [vmem:[%s3 + $0x2b8] sm:$0xff]
  %v530 = vld [vmem:[%s3 + $0x2c0] sm:$0xff]
  %v531 = vld [vmem:[%s3 + $0x2c8] sm:$0xff]
  %v532 = vld [vmem:[%s3 + $0x2d0] sm:$0xff]
  %v533 = vld [vmem:[%s3 + $0x2d8] sm:$0xff]
  %v534 = vld [vmem:[%s3 + $0x2e0] sm:$0xff]
  %v535 = vld [vmem:[%s3 + $0x2e8] sm:$0xff]
  %v536 = vld [vmem:[%s3 + $0x2f0] sm:$0xff]
  %v537 = vld [vmem:[%s3 + $0x2f8] sm:$0xff]
  %v538 = vld [vmem:[%s3 + $0x300] sm:$0xff]
  %v539 = vld [vmem:[%s3 + $0x308] sm:$0xff]
  %v540 = vld [vmem:[%s3 + $0x310] sm:$0xff]
  %v541 = vld [vmem:[%s3 + $0x318] sm:$0xff]
  %v542 = vld [vmem:[%s3 + $0x320] sm:$0xff]
  %v543 = vld [vmem:[%s3 + $0x328] sm:$0xff]
  %v544 = vld [vmem:[%s3 + $0x330] sm:$0xff]
  %v545 = vld [vmem:[%s3 + $0x338] sm:$0xff]
  %v546 = vld [vmem:[%s3 + $0x340] sm:$0xff]
  %v547 = vld [vmem:[%s3 + $0x348] sm:$0xff]
  %v548 = vld [vmem:[%s3 + $0x350] sm:$0xff]
  %v549 = vld [vmem:[%s3 + $0x358] sm:$0xff]
  %v550 = vld [vmem:[%s3 + $0x360] sm:$0xff]
  %v551 = vld [vmem:[%s3 + $0x368] sm:$0xff]
  %v552 = vld [vmem:[%s3 + $0x370] sm:$0xff]
  %v553 = vld [vmem:[%s3 + $0x378] sm:$0xff]
  %v554 = vld [vmem:[%s3 + $0x380] sm:$0xff]
  %v555 = vld [vmem:[%s3 + $0x388] sm:$0xff]
  %v556 = vld [vmem:[%s3 + $0x390] sm:$0xff]
  %v557 = vld [vmem:[%s3 + $0x398] sm:$0xff]
  %v558 = vld [vmem:[%s3 + $0x3a0] sm:$0xff]
  %v559 = vld [vmem:[%s3 + $0x3a8] sm:$0xff]
  %v560 = vld [vmem:[%s3 + $0x3b0] sm:$0xff]
  %v561 = vld [vmem:[%s3 + $0x3b8] sm:$0xff]
  %v562 = vld [vmem:[%s3 + $0x3c0] sm:$0xff]
  %v563 = vld [vmem:[%s3 + $0x3c8] sm:$0xff]
  %v564 = vld [vmem:[%s3 + $0x3d0] sm:$0xff]
  %v565 = vld [vmem:[%s3 + $0x3d8] sm:$0xff]
  %v566 = vld [vmem:[%s3 + $0x3e0] sm:$0xff]
  %v567 = vld [vmem:[%s3 + $0x3e8] sm:$0xff]
  %v568 = vld [vmem:[%s3 + $0x3f0] sm:$0xff]
  %v569 = vld [vmem:[%s3 + $0x3f8] sm:$0xff]
  %570 = vmatprep.subr.mxu0 %v443
  %571 = vmatpush1.msra.mxu0 %v442
  %572 = vmatprep.subr.mxu0 %v447
  %573 = vmatpush1.msra.mxu0 %v446
  %574 = vmatprep.subr.mxu0 %v451
  %575 = vmatpush1.msra.mxu0 %v450
  %576 = vmatprep.subr.mxu0 %v455
  %577 = vmatpush1.msra.mxu0 %v454
  %578 = vmatprep.subr.mxu0 %v459
  %579 = vmatpush1.msra.mxu0 %v458
  %580 = vmatprep.subr.mxu0 %v463
  %581 = vmatpush1.msra.mxu0 %v462
  %582 = vmatprep.subr.mxu0 %v467
  %583 = vmatpush1.msra.mxu0 %v466
  %584 = vmatprep.subr.mxu0 %v471
  %585 = vmatpush1.msra.mxu0 %v470
  %586 = vmatprep.subr.mxu0 %v475
  %587 = vmatpush1.msra.mxu0 %v474
  %588 = vmatprep.subr.mxu0 %v479
  %589 = vmatpush1.msra.mxu0 %v478
  %590 = vmatprep.subr.mxu0 %v483
  %591 = vmatpush1.msra.mxu0 %v482
  %592 = vmatprep.subr.mxu0 %v487
  %593 = vmatpush1.msra.mxu0 %v486
  %594 = vmatprep.subr.mxu0 %v491
  %595 = vmatpush1.msra.mxu0 %v490
  %596 = vmatprep.subr.mxu0 %v495
  %597 = vmatpush1.msra.mxu0 %v494
  %598 = vmatprep.subr.mxu0 %v499
  %599 = vmatpush1.msra.mxu0 %v498
  %600 = vmatprep.subr.mxu0 %v503
  %601 = vmatpush1.msra.mxu0 %v502
  %602 = vmatprep.subr.mxu0 %v507
  %603 = vmatpush1.msra.mxu0 %v506
  %604 = vmatprep.subr.mxu0 %v511
  %605 = vmatpush1.msra.mxu0 %v510
  %606 = vmatprep.subr.mxu0 %v515
  %607 = vmatpush1.msra.mxu0 %v514
  %608 = vmatprep.subr.mxu0 %v519
  %609 = vmatpush1.msra.mxu0 %v518
  %610 = vmatprep.subr.mxu0 %v523
  %611 = vmatpush1.msra.mxu0 %v522
  %612 = vmatprep.subr.mxu0 %v527
  %613 = vmatpush1.msra.mxu0 %v526
  %614 = vmatprep.subr.mxu0 %v531
  %615 = vmatpush1.msra.mxu0 %v530
  %616 = vmatprep.subr.mxu0 %v535
  %617 = vmatpush1.msra.mxu0 %v534
  %618 = vmatprep.subr.mxu0 %v539
  %619 = vmatpush1.msra.mxu0 %v538
  %620 = vmatprep.subr.mxu0 %v543
  %621 = vmatpush1.msra.mxu0 %v542
  %622 = vmatprep.subr.mxu0 %v547
  %623 = vmatpush1.msra.mxu0 %v546
  %624 = vmatprep.subr.mxu0 %v551
  %625 = vmatpush1.msra.mxu0 %v550
  %626 = vmatprep.subr.mxu0 %v555
  %627 = vmatpush1.msra.mxu0 %v554
  %628 = vmatprep.subr.mxu0 %v559
  %629 = vmatpush1.msra.mxu0 %v558
  %630 = vmatprep.subr.mxu0 %v563
  %631 = vmatpush1.msra.mxu0 %v562
  %632 = vmatprep.subr.mxu0 %v567
  %633 = vmatpush1.msra.mxu0 %v566
  %634 = vmatprep.mubr.f32.mxu0 %v441
  %635 = vmatmul.mubr.f32.gmra.mrb[0].mxu0 %v440
  %v636 = vpop.f32.mrb[0].mxu0
  %v637 = vadd.f32 0.0, %v636
  %v638 = vpop.f32.mrb[0].mxu0
  %v639 = vadd.f32 0.0, %v638
  %640 = vdwg.mxu0
  %641 = vmatprep.subr.mxu0 %v445
  %642 = vmatpush1.msra.mxu0 %v444
  %643 = vmatprep.subr.mxu0 %v449
  %644 = vmatpush1.msra.mxu0 %v448
  %645 = vmatprep.subr.mxu0 %v453
  %646 = vmatpush1.msra.mxu0 %v452
  %647 = vmatprep.subr.mxu0 %v457
  %648 = vmatpush1.msra.mxu0 %v456
  %649 = vmatprep.subr.mxu0 %v461
  %650 = vmatpush1.msra.mxu0 %v460
  %651 = vmatprep.subr.mxu0 %v465
  %652 = vmatpush1.msra.mxu0 %v464
  %653 = vmatprep.subr.mxu0 %v469
  %654 = vmatpush1.msra.mxu0 %v468
  %655 = vmatprep.subr.mxu0 %v473
  %656 = vmatpush1.msra.mxu0 %v472
  %657 = vmatprep.subr.mxu0 %v477
  %658 = vmatpush1.msra.mxu0 %v476
  %659 = vmatprep.subr.mxu0 %v481
  %660 = vmatpush1.msra.mxu0 %v480
  %661 = vmatprep.subr.mxu0 %v485
  %662 = vmatpush1.msra.mxu0 %v484
  %663 = vmatprep.subr.mxu0 %v489
  %664 = vmatpush1.msra.mxu0 %v488
  %665 = vmatprep.subr.mxu0 %v493
  %666 = vmatpush1.msra.mxu0 %v492
  %667 = vmatprep.subr.mxu0 %v497
  %668 = vmatpush1.msra.mxu0 %v496
  %669 = vmatprep.subr.mxu0 %v501
  %670 = vmatpush1.msra.mxu0 %v500
  %671 = vmatprep.subr.mxu0 %v505
  %672 = vmatpush1.msra.mxu0 %v504
  %673 = vmatprep.subr.mxu0 %v509
  %674 = vmatpush1.msra.mxu0 %v508
  %675 = vmatprep.subr.mxu0 %v513
  %676 = vmatpush1.msra.mxu0 %v512
  %677 = vmatprep.subr.mxu0 %v517
  %678 = vmatpush1.msra.mxu0 %v516
  %679 = vmatprep.subr.mxu0 %v521
  %680 = vmatpush1.msra.mxu0 %v520
  %681 = vmatprep.subr.mxu0 %v525
  %682 = vmatpush1.msra.mxu0 %v524
  %683 = vmatprep.subr.mxu0 %v529
  %684 = vmatpush1.msra.mxu0 %v528
  %685 = vmatprep.subr.mxu0 %v533
  %686 = vmatpush1.msra.mxu0 %v532
  %687 = vmatprep.subr.mxu0 %v537
  %688 = vmatpush1.msra.mxu0 %v536
  %689 = vmatprep.subr.mxu0 %v541
  %690 = vmatpush1.msra.mxu0 %v540
  %691 = vmatprep.subr.mxu0 %v545
  %692 = vmatpush1.msra.mxu0 %v544
  %693 = vmatprep.subr.mxu0 %v549
  %694 = vmatpush1.msra.mxu0 %v548
  %695 = vmatprep.subr.mxu0 %v553
  %696 = vmatpush1.msra.mxu0 %v552
  %697 = vmatprep.subr.mxu0 %v557
  %698 = vmatpush1.msra.mxu0 %v556
  %699 = vmatprep.subr.mxu0 %v561
  %700 = vmatpush1.msra.mxu0 %v560
  %701 = vmatprep.subr.mxu0 %v565
  %702 = vmatpush1.msra.mxu0 %v564
  %703 = vmatprep.subr.mxu0 %v569
  %704 = vmatpush1.msra.mxu0 %v568
  %705 = vmatprep.mubr.f32.mxu0 %v441
  %706 = vmatmul.mubr.f32.gmra.mrb[0].mxu0 %v440
  %v707 = vpop.f32.mrb[0].mxu0
  %v708 = vadd.f32 0.0, %v707
  %v709 = vpop.f32.mrb[0].mxu0
  %v710 = vadd.f32 0.0, %v709
  %711 = vdwg.mxu0
  %v712 = vld [vmem:[%s4] sm:$0x1]
  %v713 = vadd.f32 %v712, %v637
  %v716 = vunpack.c.l.s4 1966171168
  %v717 = vunpack.c.0.s8 %v716
  %v718 = vlaneseq
  %v719 = vshrl.u32 %v718, 7
  %v720 = vsub.s32 %v717, %v719
  %v721 = vrot.slane %v639, %v720
  %v722 = vcombine.high %v721, %v721
  %v724 = vunpack.c.l.s4 1966171168
  %v725 = vunpack.c.0.s8 %v724
  %v726 = vlaneseq
  %v727 = vshrl.u32 %v726, 7
  %v728 = vsub.s32 %v725, %v727
  %v729 = vrot.slane %v722, %v728
  %v731 = vadd.f32 %v713, %v729
  %v734 = vunpack.c.l.s4 1966171168
  %v735 = vunpack.c.0.s8 %v734
  %v736 = vlaneseq
  %v737 = vshrl.u32 %v736, 7
  %v738 = vsub.s32 %v735, %v737
  %v739 = vrot.slane %v708, %v738
  %v741 = vunpack.c.l.s4 1966171168
  %v742 = vunpack.c.0.s8 %v741
  %v743 = vlaneseq
  %v744 = vshrl.u32 %v743, 7
  %v745 = vsub.s32 %v742, %v744
  %v746 = vrot.slane %v739, %v745
  %v747 = vcombine.high %v746, %v746
  %v749 = vadd.f32 %v731, %v747
  %v752 = vunpack.c.l.s4 1966171168
  %v753 = vunpack.c.0.s8 %v752
  %v754 = vlaneseq
  %v755 = vshrl.u32 %v754, 7
  %v756 = vsub.s32 %v753, %v755
  %v757 = vrot.slane %v710, %v756
  %v758 = vcombine.high %v757, %v757
  %v760 = vunpack.c.l.s4 1966171168
  %v761 = vunpack.c.0.s8 %v760
  %v762 = vlaneseq
  %v763 = vshrl.u32 %v762, 7
  %v764 = vsub.s32 %v761, %v763
  %v765 = vrot.slane %v758, %v764
  %v766 = vcombine.high %v765, %v765
  %v768 = vadd.f32 %v749, %v766
  %v769 = vsel %vm119, %v768, -inf
  %770 = vmax.xlane.f32.xlu0 %v769
  %v771 = vpop.xlane.xlu0 %770
  %v772 = vsub.f32 %v768, %v771
  %v773 = vmul.f32 %v772, 1.442695
  %v774 = vpow.pop %v773
  %v775 = vsel %vm119, %v774, 0.0
  %776 = vadd.xlane.f32.xlu0 %v775
  %v777 = vpop.xlane.xlu0 %776
  %v778 = vrcp.pop %v777
  %v779 = vmul.f32 %v774, %v778
  %780 = vst [vmem:[%s5] sm:$0x1] %v779
  // Predicated region
  $region22: #{mnist_encoder_conv_forward.1} parent=0 // pred_check
    _
  $region23: #{mnist_encoder_conv_forward.1} parent=0 // pred_check_branch
    %782 = sbr.rel (0) target = $region25
  $region24: #{mnist_encoder_conv_forward.1} parent=0 // pred_region
    _
  $region25: #{mnist_encoder_conv_forward.1} parent=0 // pred_fallthru
    _
  // Predicated region
  $region26: #{mnist_encoder_conv_forward.1} parent=0 // pred_check
    _
  $region27: #{mnist_encoder_conv_forward.1} parent=0 // pred_check_branch
    %784 = sbr.rel (0) target = $region29
  $region28: #{mnist_encoder_conv_forward.1} parent=0 // pred_region
    _
  $region29: #{mnist_encoder_conv_forward.1} parent=0 // pred_fallthru
    _

</llo_original>
